<compile_context>
chip_gen: v6e
topology: v6e:2x2x1
jax: 0.10.0
libtpu: 0.0.40
codegen_flags: <defaults>
</compile_context>

<pallas_src>
import functools

import jax
import jax.numpy as jnp
from jax import lax
from jax.experimental import pallas as pl
from jax.experimental.pallas import tpu as pltpu


def _cdiv(a, b):
    return -(-a // b)


def _round_up(x, m):
    return _cdiv(x, m) * m


def _packed_one_hot_kernel(idx_ref, out_ref, *, size, r):
    # idx_ref: (TR, r) int32 ; out_ref: (TR, 128) float32, with r * size == 128.
    tr, w = out_ref.shape
    lanes = lax.broadcasted_iota(jnp.int32, (tr, w), 1)
    acc = jnp.zeros((tr, w), jnp.float32)
    for s in range(r):  # r <= 16, unrolled at trace time; VPU work hidden by DMA
        # Lane position of the "1" for packed slot s of each row.
        tgt = idx_ref[:, s:s + 1] + s * size          # (TR, 1) -> lane broadcast
        acc = jnp.where(lanes == tgt, 1.0, acc)
    out_ref[...] = acc.astype(out_ref.dtype)


def _tiled_one_hot_kernel(idx_ref, out_ref):
    # idx_ref: (TN, 1) int32 ; out_ref: (TN, TS) float32 tile of class columns
    # [j*TS, j*TS + TS) for column-tile j.
    tn, ts = out_ref.shape
    col0 = pl.program_id(1) * ts
    cols = col0 + lax.broadcasted_iota(jnp.int32, (tn, ts), 1)
    out_ref[...] = jnp.where(cols == idx_ref[...], 1.0, 0.0).astype(out_ref.dtype)


@functools.partial(jax.jit, static_argnames=("size",))
def one_hot_embedding(index, size):
    """Pallas equivalent of OneHotEmbedding(size).forward(index)."""
    index = jnp.asarray(index)
    orig_shape = index.shape
    idx = index.reshape(-1).astype(jnp.int32)
    # torch's eye[index] wraps negative indices in [-size, 0).
    idx = jnp.where(idx < 0, idx + size, idx)
    # Remaining invalid indices -> sentinel that never matches any column/lane
    # (yields an all-zero row; torch would raise).
    idx = jnp.where((idx < 0) | (idx >= size), jnp.int32(2 ** 30), idx)
    n = int(idx.shape[0])
    if n == 0:
        return jnp.zeros((*orig_shape, size), jnp.float32)

    if size <= 128 and 128 % size == 0 and (128 // size) <= 16:
        # ---- packed path: r indices per lane-dense 128-wide output row ----
        r = 128 // size
        w = 128
        rows = _cdiv(n, r)
        tr = min(1024, _round_up(rows, 8))            # packed rows per grid step
        rows_pad = _round_up(rows, tr)
        n_pad = rows_pad * r
        idx2 = jnp.pad(idx, (0, n_pad - n)).reshape(rows_pad, r)

        out = pl.pallas_call(
            functools.partial(_packed_one_hot_kernel, size=size, r=r),
            out_shape=jax.ShapeDtypeStruct((rows_pad, w), jnp.float32),
            grid_spec=pltpu.PrefetchScalarGridSpec(
                num_scalar_prefetch=0,
                grid=(rows_pad // tr,),
                in_specs=[pl.BlockSpec((tr, r), lambda i: (i, 0))],
                out_specs=pl.BlockSpec((tr, w), lambda i: (i, 0)),
            ),
            compiler_params=pltpu.CompilerParams(
                dimension_semantics=("parallel",)),
        )(idx2)
        # (rows_pad, r*size) -> (rows_pad*r, size) is a row-major no-op reshape.
        out = out.reshape(n_pad, size)[:n]
    else:
        # ---- generic path: tile rows; tile classes when lane-dense ----
        if size % 128 == 0:
            ts = min(size, 1024)                      # lane-dense class tile
        else:
            ts = size                                 # full last dim (always legal)
        col_tiles = _cdiv(size, ts)
        tn = (2 * 1024 * 1024) // (4 * ts)            # ~2 MiB output tile budget
        tn = max(8, (min(2048, tn, _round_up(n, 8)) // 8) * 8)
        n_pad = _round_up(n, tn)
        idx2 = jnp.pad(idx, (0, n_pad - n)).reshape(n_pad, 1)

        out = pl.pallas_call(
            _tiled_one_hot_kernel,
            out_shape=jax.ShapeDtypeStruct((n_pad, size), jnp.float32),
            grid_spec=pltpu.PrefetchScalarGridSpec(
                num_scalar_prefetch=0,
                grid=(n_pad // tn, col_tiles),
                in_specs=[pl.BlockSpec((tn, 1), lambda i, j: (i, 0))],
                out_specs=pl.BlockSpec((tn, ts), lambda i, j: (i, j)),
            ),
            compiler_params=pltpu.CompilerParams(
                dimension_semantics=("parallel", "parallel")),
        )(idx2)
        out = out[:n]

    return out.reshape(*orig_shape, size)


def one_hot_embedding_ref(index, size):
    """Plain-JAX reference: literal eye[index] gather."""
    eye = jnp.eye(size, size, dtype=jnp.float32)
    return eye[index]


if __name__ == "__main__":
    key = jax.random.PRNGKey(0)
    B, S, SIZE = 2, 8, 32
    index = jax.random.randint(key, (B, S), 0, SIZE, dtype=jnp.int32)

    out = jax.block_until_ready(one_hot_embedding(index, SIZE))
    ref = one_hot_embedding_ref(index, SIZE)
    assert out.shape == (B, S, SIZE), out.shape
    assert out.dtype == jnp.float32, out.dtype
    assert jnp.array_equal(out, ref), "packed path mismatch vs eye[index]"

    # Packed path with N not a multiple of the pack factor / row tile.
    idx_odd = jax.random.randint(jax.random.PRNGKey(1), (3, 5), 0, SIZE,
                                 dtype=jnp.int32)
    out_odd = jax.block_until_ready(one_hot_embedding(idx_odd, SIZE))
    assert jnp.array_equal(out_odd, one_hot_embedding_ref(idx_odd, SIZE)), \
        "packed path (ragged N) mismatch"

    # Generic path: size a multiple of 128 (lane-dense class tiling).
    SIZE2 = 256
    idx2 = jax.random.randint(jax.random.PRNGKey(2), (2, 7), 0, SIZE2,
                              dtype=jnp.int32)
    out2 = jax.block_until_ready(one_hot_embedding(idx2, SIZE2))
    assert jnp.array_equal(out2, one_hot_embedding_ref(idx2, SIZE2)), \
        "generic path (size % 128 == 0) mismatch"

    # Generic path: ragged size (not a multiple of 128).
    SIZE3 = 200
    idx3 = jax.random.randint(jax.random.PRNGKey(3), (2, 9), 0, SIZE3,
                              dtype=jnp.int32)
    out3 = jax.block_until_ready(one_hot_embedding(idx3, SIZE3))
    assert jnp.array_equal(out3, one_hot_embedding_ref(idx3, SIZE3)), \
        "generic path (ragged size) mismatch"

    print("KERNEL_OK")
</pallas_src>

<mosaic_0001>
module attributes {stable_mosaic.version = 11 : i64} {
  func.func @_packed_one_hot_kernel(%arg0: i32, %arg1: memref<8x4xi32, #tpu.memory_space<vmem>>, %arg2: memref<8x128xf32, #tpu.memory_space<vmem>>) attributes {dimension_semantics = [#tpu.dimension_semantics<parallel>], iteration_bounds = array<i64: 1>, scalar_prefetch = 0 : i64, scratch_operands = 0 : i64, tpu.core_type = #tpu.core_type<tc>, window_params = [{transform_indices = @transform_0, window_bounds = array<i64: 8, 4>}, {transform_indices = @transform_1, window_bounds = array<i64: 8, 128>}]} {
    %0 = tpu.iota {dimensions = array<i32: 1>} : vector<8x128xi32>
    %cst = arith.constant 0.000000e+00 : f32
    %1 = vector.broadcast %cst : f32 to vector<8x128xf32>
    %c0 = arith.constant 0 : index
    %c0_0 = arith.constant 0 : index
    %2 = vector.load %arg1[%c0, %c0_0] : memref<8x4xi32, #tpu.memory_space<vmem>>, vector<8x1xi32>
    %c0_i32 = arith.constant 0 : i32
    %3 = vector.broadcast %c0_i32 : i32 to vector<8x1xi32>
    %4 = arith.addi %2, %3 : vector<8x1xi32>
    %5 = vector.broadcast %4 : vector<8x1xi32> to vector<8x128xi32>
    %6 = arith.cmpi eq, %0, %5 : vector<8x128xi32>
    %cst_1 = arith.constant 1.000000e+00 : f32
    %7 = vector.broadcast %cst_1 : f32 to vector<8x128xf32>
    %8 = arith.select %6, %7, %1 : vector<8x128xi1>, vector<8x128xf32>
    %c0_2 = arith.constant 0 : index
    %c1 = arith.constant 1 : index
    %9 = vector.load %arg1[%c0_2, %c1] : memref<8x4xi32, #tpu.memory_space<vmem>>, vector<8x1xi32>
    %c32_i32 = arith.constant 32 : i32
    %10 = vector.broadcast %c32_i32 : i32 to vector<8x1xi32>
    %11 = arith.addi %9, %10 : vector<8x1xi32>
    %12 = vector.broadcast %11 : vector<8x1xi32> to vector<8x128xi32>
    %13 = arith.cmpi eq, %0, %12 : vector<8x128xi32>
    %cst_3 = arith.constant 1.000000e+00 : f32
    %14 = vector.broadcast %cst_3 : f32 to vector<8x128xf32>
    %15 = arith.select %13, %14, %8 : vector<8x128xi1>, vector<8x128xf32>
    %c0_4 = arith.constant 0 : index
    %c2 = arith.constant 2 : index
    %16 = vector.load %arg1[%c0_4, %c2] : memref<8x4xi32, #tpu.memory_space<vmem>>, vector<8x1xi32>
    %c64_i32 = arith.constant 64 : i32
    %17 = vector.broadcast %c64_i32 : i32 to vector<8x1xi32>
    %18 = arith.addi %16, %17 : vector<8x1xi32>
    %19 = vector.broadcast %18 : vector<8x1xi32> to vector<8x128xi32>
    %20 = arith.cmpi eq, %0, %19 : vector<8x128xi32>
    %cst_5 = arith.constant 1.000000e+00 : f32
    %21 = vector.broadcast %cst_5 : f32 to vector<8x128xf32>
    %22 = arith.select %20, %21, %15 : vector<8x128xi1>, vector<8x128xf32>
    %c0_6 = arith.constant 0 : index
    %c3 = arith.constant 3 : index
    %23 = vector.load %arg1[%c0_6, %c3] : memref<8x4xi32, #tpu.memory_space<vmem>>, vector<8x1xi32>
    %c96_i32 = arith.constant 96 : i32
    %24 = vector.broadcast %c96_i32 : i32 to vector<8x1xi32>
    %25 = arith.addi %23, %24 : vector<8x1xi32>
    %26 = vector.broadcast %25 : vector<8x1xi32> to vector<8x128xi32>
    %27 = arith.cmpi eq, %0, %26 : vector<8x128xi32>
    %cst_7 = arith.constant 1.000000e+00 : f32
    %28 = vector.broadcast %cst_7 : f32 to vector<8x128xf32>
    %29 = arith.select %27, %28, %22 : vector<8x128xi1>, vector<8x128xf32>
    %c0_8 = arith.constant 0 : index
    %c0_9 = arith.constant 0 : index
    %30 = vector.load %arg2[%c0_8, %c0_9] : memref<8x128xf32, #tpu.memory_space<vmem>>, vector<8x128xf32>
    tpu.vector_store %arg2[%c0_8, %c0_9], %29 {strides = array<i32>} : memref<8x128xf32, #tpu.memory_space<vmem>>, vector<8x128xf32>,
    return
  }
  func.func @transform_0(%arg0: i32) -> (i32, i32) {
    %c0_i32 = arith.constant 0 : i32
    %c0_i32_0 = arith.constant 0 : i32
    return %arg0, %c0_i32 : i32, i32
  }
  func.func @transform_1(%arg0: i32) -> (i32, i32) {
    %c0_i32 = arith.constant 0 : i32
    %c0_i32_0 = arith.constant 0 : i32
    return %arg0, %c0_i32 : i32, i32
  }
}

</mosaic_0001>

<llo_original>
// kernel: one_hot_embedding.1
$region0: #{one_hot_embedding.1}
  #allocation0 [shape = 'u32[]', space=smem, size = 0x4, offset = 0x4, fixed_abs, tag = 'smem constant byte address 0x4 - core index']
  #allocation1 [shape = 'u32[144,128]{1,0:T(1,128)}', space=vmem, size = 0x12000, scoped, tag = 'internal scratch']
  %s0 = inlined_call_operand.vmem [shape: s32[8,4], index: 0, kind: input, shape index: {}]
  %s1 = inlined_call_operand.vmem [shape: f32[8,128], index: 1, kind: output, shape index: {}]
  %s2 = sld [smem:[#allocation0]]
  $region14: #{one_hot_embedding.1} parent=0
    _
  %s4 = ssub.s32 1, %s2
  %s5 = scalar_select 0, %s4, %s2
  // Predicated region
  $region2: #{one_hot_embedding.1} parent=0 // pred_check
    _
  $region3: #{one_hot_embedding.1} parent=0 // pred_check_branch
    %7 = sbr.rel (0) target = $region5
  $region4: #{one_hot_embedding.1} parent=0 // pred_region
    _
  $region5: #{one_hot_embedding.1} parent=0 // pred_fallthru
    _
  %v8 = vlaneseq
  %v9 = vand.u32 %v8, 127
  %v10 = vld [vmem:[%s0] sm:$0xff]
  %11 = vset.pattern.permute.xlu0 0
  %12 = vperm.xlu0 %11, %v10
  %v13 = vpop.permute.xlu0 %12
  %vm14 = vcmp.eq.s32.totalorder %v9, %v13
  %v15 = vsel %vm14, 1.0, 0.0
  %v16 = vadd.s32 %v10, 32
  %17 = vset.pattern.permute.xlu0 1
  %18 = vperm.xlu0 %17, %v16
  %v19 = vpop.permute.xlu0 %18
  %vm20 = vcmp.eq.s32.totalorder %v9, %v19
  %v21 = vsel %vm20, 1.0, %v15
  %v22 = vadd.s32 %v10, 64
  %23 = vset.pattern.permute.xlu0 2
  %24 = vperm.xlu0 %23, %v22
  %v25 = vpop.permute.xlu0 %24
  %vm26 = vcmp.eq.s32.totalorder %v9, %v25
  %v27 = vsel %vm26, 1.0, %v21
  %v28 = vadd.s32 %v10, 96
  %29 = vset.pattern.permute.xlu0 3
  %30 = vperm.xlu0 %29, %v28
  %v31 = vpop.permute.xlu0 %30
  %vm32 = vcmp.eq.s32.totalorder %v9, %v31
  %v33 = vsel %vm32, 1.0, %v27
  %34 = vst [vmem:[%s1] sm:$0xff] %v33
  // Predicated region
  $region6: #{one_hot_embedding.1} parent=0 // pred_check
    _
  $region7: #{one_hot_embedding.1} parent=0 // pred_check_branch
    %36 = sbr.rel (0) target = $region9
  $region8: #{one_hot_embedding.1} parent=0 // pred_region
    _
  $region9: #{one_hot_embedding.1} parent=0 // pred_fallthru
    _
  // Predicated region
  $region10: #{one_hot_embedding.1} parent=0 // pred_check
    _
  $region11: #{one_hot_embedding.1} parent=0 // pred_check_branch
    %38 = sbr.rel (0) target = $region13
  $region12: #{one_hot_embedding.1} parent=0 // pred_region
    _
  $region13: #{one_hot_embedding.1} parent=0 // pred_fallthru
    _

</llo_original>
